<compile_context>
chip_gen: v5e
topology: v5e:2x2
jax: 0.10.0
libtpu: 0.0.40
codegen_flags: <defaults>
</compile_context>

<pallas_src>
import jax
import jax.numpy as jnp
from jax.experimental import pallas as pl
from jax.experimental.pallas import tpu as pltpu

_LANES = 128        # vreg lane width (fast axis)
_SUBLANES = 8       # f32 sublane tiling
# (2048, 128) f32 tile = 1 MiB per buffer -> ~4 MiB with in/out double
# buffering; amortizes the ~0.35 us/step overhead and fits every generation.
_BLOCK_ROWS = 2048


def _relu_kernel(x_ref, o_ref):
    x = x_ref[...]
    # dtype-matched zero: no weak-type promotion, single cmp+select per vreg.
    o_ref[...] = jnp.maximum(x, jnp.zeros((), x.dtype))


def _round_up(n: int, m: int) -> int:
    return ((n + m - 1) // m) * m


def _relu_impl(x: jax.Array, block_rows: int) -> jax.Array:
    orig_shape = x.shape
    n = x.size
    if n == 0:
        return x

    flat = x.reshape(-1)

    # Lane-dense 2-D slab: last dim = 128 lanes, rows padded so the block
    # shape (block_rows, 128) tiles it exactly and respects (8, 128) tiling.
    rows = pl.cdiv(n, _LANES)
    block_rows = min(block_rows, _round_up(rows, _SUBLANES))
    block_rows = _round_up(block_rows, _SUBLANES)
    rows_pad = _round_up(rows, block_rows)
    n_pad = rows_pad * _LANES

    if n_pad != n:
        flat = jnp.pad(flat, (0, n_pad - n))
    slab = flat.reshape(rows_pad, _LANES)

    out = pl.pallas_call(
        _relu_kernel,
        out_shape=jax.ShapeDtypeStruct(slab.shape, slab.dtype),
        grid=(rows_pad // block_rows,),
        in_specs=[pl.BlockSpec((block_rows, _LANES), lambda i: (i, 0))],
        out_specs=pl.BlockSpec((block_rows, _LANES), lambda i: (i, 0)),
        # In-place in HBM for the large-tensor path (neutral at tiny sizes).
        input_output_aliases={0: 0},
        compiler_params=pltpu.CompilerParams(
            dimension_semantics=("parallel",),
            vmem_limit_bytes=32 * 1024 * 1024,  # safe on v5e/v6e/v7x
        ),
    )(slab)

    return out.reshape(-1)[:n].reshape(orig_shape)


@jax.jit
def relu_pallas(x: jax.Array) -> jax.Array:
    """Elementwise ReLU, matching torch.nn.ReLU semantics, for any shape."""
    return _relu_impl(x, _BLOCK_ROWS)


if __name__ == "__main__":
    key = jax.random.PRNGKey(0)
    # Shape matches the module's input: [1, 308, 1, 1] (NCHW)
    x225 = jax.random.normal(key, (1, 308, 1, 1), dtype=jnp.float32)

    x226 = relu_pallas(x225)
    jax.block_until_ready(x226)

    # correctness check against pure-JAX reference
    ref = jnp.maximum(x225, 0.0)
    assert x226.shape == (1, 308, 1, 1)
    assert x226.dtype == x225.dtype
    assert jnp.array_equal(x226, ref), "mismatch vs reference ReLU"

    print("KERNEL_OK")
</pallas_src>

<mosaic_0001>
module attributes {stable_mosaic.version = 11 : i64} {
  func.func @_relu_kernel(%arg0: i32, %arg1: memref<8x128xf32, #tpu.memory_space<vmem>>, %arg2: memref<8x128xf32, #tpu.memory_space<vmem>>) attributes {dimension_semantics = [#tpu.dimension_semantics<parallel>], iteration_bounds = array<i64: 1>, scalar_prefetch = 0 : i64, scratch_operands = 0 : i64, tpu.core_type = #tpu.core_type<tc>, window_params = [{transform_indices = @transform_0, window_bounds = array<i64: 8, 128>}, {transform_indices = @transform_1, window_bounds = array<i64: 8, 128>}]} {
    %c0 = arith.constant 0 : index
    %c0_0 = arith.constant 0 : index
    %0 = vector.load %arg1[%c0, %c0_0] : memref<8x128xf32, #tpu.memory_space<vmem>>, vector<8x128xf32>
    %cst = arith.constant 0.000000e+00 : f32
    %1 = vector.broadcast %cst : f32 to vector<8x128xf32>
    %2 = arith.maximumf %0, %1 : vector<8x128xf32>
    %c0_1 = arith.constant 0 : index
    %c0_2 = arith.constant 0 : index
    %3 = vector.load %arg2[%c0_1, %c0_2] : memref<8x128xf32, #tpu.memory_space<vmem>>, vector<8x128xf32>
    tpu.vector_store %arg2[%c0_1, %c0_2], %2 {strides = array<i32>} : memref<8x128xf32, #tpu.memory_space<vmem>>, vector<8x128xf32>,
    return
  }
  func.func @transform_0(%arg0: i32) -> (i32, i32) {
    %c0_i32 = arith.constant 0 : i32
    %c0_i32_0 = arith.constant 0 : i32
    return %arg0, %c0_i32 : i32, i32
  }
  func.func @transform_1(%arg0: i32) -> (i32, i32) {
    %c0_i32 = arith.constant 0 : i32
    %c0_i32_0 = arith.constant 0 : i32
    return %arg0, %c0_i32 : i32, i32
  }
}

</mosaic_0001>

<llo_original>
// kernel: relu_pallas.1
$region0: #{relu_pallas.1}
  #allocation0 [shape = 'u32[]', space=smem, size = 0x4, offset = 0x4, fixed_abs, tag = 'smem constant byte address 0x4 - core index']
  #allocation1 [shape = 'u32[72,128]{1,0:T(1,128)}', space=vmem, size = 0x9000, scoped, tag = 'internal scratch']
  %s0 = inlined_call_operand.vmem [shape: f32[8,128], index: 0, kind: input, shape index: {}, may-alias: {0,1}]
  %s1 = inlined_call_operand.vmem [shape: f32[8,128], index: 1, kind: output, shape index: {}, may-alias: {0,1}]
  %s2 = sld [smem:[#allocation0]]
  $region14: #{relu_pallas.1} parent=0
    _
  %s4 = ssub.s32 1, %s2
  %s5 = scalar_select 0, %s4, %s2
  // Predicated region
  $region2: #{relu_pallas.1} parent=0 // pred_check
    _
  $region3: #{relu_pallas.1} parent=0 // pred_check_branch
    %7 = sbr.rel (0) target = $region5
  $region4: #{relu_pallas.1} parent=0 // pred_region
    _
  $region5: #{relu_pallas.1} parent=0 // pred_fallthru
    _
  %v8 = vld [vmem:[%s0] sm:$0xff]
  %v9 = vmax.f32 %v8, 0.0
  %10 = vst [vmem:[%s1] sm:$0xff] %v9
  // Predicated region
  $region6: #{relu_pallas.1} parent=0 // pred_check
    _
  $region7: #{relu_pallas.1} parent=0 // pred_check_branch
    %12 = sbr.rel (0) target = $region9
  $region8: #{relu_pallas.1} parent=0 // pred_region
    _
  $region9: #{relu_pallas.1} parent=0 // pred_fallthru
    _
  // Predicated region
  $region10: #{relu_pallas.1} parent=0 // pred_check
    _
  $region11: #{relu_pallas.1} parent=0 // pred_check_branch
    %14 = sbr.rel (0) target = $region13
  $region12: #{relu_pallas.1} parent=0 // pred_region
    _
  $region13: #{relu_pallas.1} parent=0 // pred_fallthru
    _

</llo_original>
